<compile_context>
chip_gen: v6e
topology: v6e:2x2x1
jax: 0.10.0
libtpu: 0.0.40
codegen_flags: <defaults>
</compile_context>

<pallas_src>
import functools
from typing import List, NamedTuple, Tuple

import jax
import jax.numpy as jnp
from jax import lax
from jax.experimental import pallas as pl
from jax.experimental.pallas import tpu as pltpu

_LANE = 128
_SUBLANE = 8
_TARGET_TM = 512                  # swept batch-tile target (256-512 per review)
_MATMUL_DTYPE = jnp.bfloat16      # matmul operands only; everything else f32
_EULER_UNROLL = 4                 # partial unroll of the in-kernel time loop


def _round_up(x: int, m: int) -> int:
    return ((x + m - 1) // m) * m


def _choose_tile(batch: int) -> Tuple[int, int]:
    """Pick (tm, padded_batch): tm is a multiple of 8, capped at _TARGET_TM,
    and chosen so the grid has >= 2 tiles whenever the batch allows it (so
    ("parallel",) can shard tiles across both v7x TensorCores)."""
    half = (batch + 1) // 2
    tm = min(_TARGET_TM, max(_SUBLANE, _round_up(half, _SUBLANE)))
    b_pad = _round_up(batch, tm)
    return tm, b_pad


class PackedParams(NamedTuple):
    w_slab: jax.Array   # (num_linear, P, P) zero-padded, (in, out) layout, bf16
    b_slab: jax.Array   # (num_linear, 1, P) zero-padded, f32 (bias add stays f32)
    out_dim: int        # true output width of the last layer


def pack_params(params: List[Tuple[jax.Array, jax.Array]]) -> PackedParams:
    """Pack per-layer (W, b) into two uniform padded slabs (one DMA each)."""
    num_linear = len(params)
    max_dim = max(max(w.shape) for (w, _) in params)
    p = _round_up(max_dim, _LANE)
    w_slab = jnp.zeros((num_linear, p, p), jnp.float32)
    b_slab = jnp.zeros((num_linear, 1, p), jnp.float32)
    for l, (w, b) in enumerate(params):
        din, dout = w.shape
        w_slab = w_slab.at[l, :din, :dout].set(w.astype(jnp.float32))
        b_slab = b_slab.at[l, :1, :dout].set(b.reshape(1, -1).astype(jnp.float32))
    return PackedParams(w_slab.astype(_MATMUL_DTYPE), b_slab,
                        int(params[-1][0].shape[1]))


# ---------------------------------------------------------------------------
# Kernels
# ---------------------------------------------------------------------------
def _mlp(h, w_ref, biases, num_linear):
    """MLP body: Tanh after every layer except the last (matches the module).

    Zero-padded lanes stay exactly zero through every layer (zero weight
    columns + zero biases => pre-activation 0, tanh(0)=0), so padding never
    leaks into the real outputs.  Only the matmul operands are bf16; the
    accumulation (preferred_element_type), bias add and tanh are f32.
    """
    for l in range(num_linear):
        z = jnp.dot(h.astype(_MATMUL_DTYPE), w_ref[l],
                    preferred_element_type=jnp.float32) + biases[l]
        h = jnp.tanh(z) if l < num_linear - 1 else z
    return h


def _forward_kernel(num_linear, y_ref, w_ref, b_ref, out_ref):
    """Single evaluation of net(y) for one (tm, P) batch tile."""
    biases = [b_ref[l] for l in range(num_linear)]          # (1, P) each
    h = _mlp(y_ref[...].astype(jnp.float32), w_ref, biases, num_linear)
    out_ref[...] = h.astype(out_ref.dtype)


def _euler_kernel(num_linear, num_steps, dt, y_ref, w_ref, b_ref, out_ref):
    """Fused fixed-step Euler solve: num_steps MLP evaluations in one call.

    Weights/biases stay resident in VMEM; the time loop is an in-kernel,
    partially unrolled fori_loop so per-step launch/DMA overhead is paid once.
    Biases are kept as (1, P) values (a handful of vregs) and broadcast
    implicitly in the add -- NOT pre-broadcast to (tm, P) tiles, which would
    spill the register file.
    """
    biases = [b_ref[l] for l in range(num_linear)]
    y0 = y_ref[...].astype(jnp.float32)

    def body(_, y):
        return y + dt * _mlp(y, w_ref, biases, num_linear)

    unroll = min(_EULER_UNROLL, max(num_steps, 1))
    out_ref[...] = lax.fori_loop(0, num_steps, body, y0,
                                 unroll=unroll).astype(out_ref.dtype)


# ---------------------------------------------------------------------------
# pallas_call wrapper
# ---------------------------------------------------------------------------
def _pallas_mlp_call(kernel_fn, y_pad, packed: PackedParams, tm, *,
                     io_alias=False):
    """Run kernel_fn over a pre-padded (b_pad, P) f32 state in (tm, P) tiles."""
    w_slab, b_slab, _ = packed
    b_pad, p = y_pad.shape
    num_linear = w_slab.shape[0]
    assert b_pad % tm == 0 and p == w_slab.shape[1]

    def call(weight_mode, alias):
        wkw = {} if weight_mode is None else {"pipeline_mode": weight_mode}
        in_specs = [
            pl.BlockSpec((tm, p), lambda i: (i, 0)),                       # state
            pl.BlockSpec((num_linear, p, p), lambda i: (0, 0, 0), **wkw),  # weights (resident)
            pl.BlockSpec((num_linear, 1, p), lambda i: (0, 0, 0), **wkw),  # biases  (resident)
        ]
        extra = {"input_output_aliases": {0: 0}} if alias else {}
        return pl.pallas_call(
            kernel_fn,
            grid=(b_pad // tm,),
            in_specs=in_specs,
            out_specs=pl.BlockSpec((tm, p), lambda i: (i, 0)),   # lane-dense store
            out_shape=jax.ShapeDtypeStruct((b_pad, p), jnp.float32),
            compiler_params=pltpu.CompilerParams(
                dimension_semantics=("parallel",),   # megacore split on v7x
                vmem_limit_bytes=32 * 1024 * 1024,   # explicit (v5e default is 16 MiB)
            ),
            **extra,
        )(y_pad, w_slab, b_slab)

    # Preferred configuration first, then graceful fallbacks so the kernel
    # always runs even if single-buffered resident specs / aliasing are
    # unavailable in this Pallas build.
    attempts = []
    buffered = getattr(pl, "Buffered", None)
    if buffered is not None:
        attempts.append((buffered(1), io_alias))
    attempts.append((None, io_alias))
    if io_alias:
        attempts.append((None, False))
    last_err = None
    for weight_mode, alias in attempts:
        try:
            return call(weight_mode, alias)
        except Exception as e:  # fall back to the next configuration
            last_err = e
    raise last_err


# ---------------------------------------------------------------------------
# Public API
# ---------------------------------------------------------------------------
class PaddedState(NamedTuple):
    y_pad: jax.Array   # (b_pad, P) f32, batch- and lane-padded with zeros
    batch: int
    tm: int


def pad_state(y, packed: PackedParams) -> PaddedState:
    batch, d_in = y.shape
    p = packed.w_slab.shape[1]
    tm, b_pad = _choose_tile(batch)
    y_pad = jnp.pad(y.astype(jnp.float32), ((0, b_pad - batch), (0, p - d_in)))
    return PaddedState(y_pad, batch, tm)


def unpad_state(st: PaddedState, packed: PackedParams, dtype=jnp.float32):
    return st.y_pad[:st.batch, :packed.out_dim].astype(dtype)


def ode_func_forward(t, y, packed: PackedParams):
    """AugmentedODEFunc.forward(t, y): returns net(y). `t` is unused."""
    del t
    st = pad_state(y, packed)
    num_linear = packed.w_slab.shape[0]
    out_pad = _pallas_mlp_call(functools.partial(_forward_kernel, num_linear),
                               st.y_pad, packed, st.tm)
    return out_pad[:st.batch, :packed.out_dim].astype(y.dtype)


def ode_func_forward_padded(t, st: PaddedState, packed: PackedParams) -> PaddedState:
    """Padded-layout forward for external-solver loops: avoids the per-call
    pad/unpad HBM round trips.  Padded lanes remain exactly zero, so the
    returned state can be iterated in place (y <- y + dt * f)."""
    del t
    num_linear = packed.w_slab.shape[0]
    out_pad = _pallas_mlp_call(functools.partial(_forward_kernel, num_linear),
                               st.y_pad, packed, st.tm)
    return PaddedState(out_pad, st.batch, st.tm)


def euler_integrate(y0, packed: PackedParams, dt, num_steps):
    """Fused ODE solve: y_{n+1} = y_n + dt*net(y_n), all steps in ONE kernel."""
    batch, d = y0.shape
    assert packed.out_dim == d, "ODE state must have in_dim == out_dim"
    st = pad_state(y0, packed)          # internally-built buffer: safe to alias
    num_linear = packed.w_slab.shape[0]
    kernel = functools.partial(_euler_kernel, num_linear, int(num_steps),
                               float(dt))
    out_pad = _pallas_mlp_call(kernel, st.y_pad, packed, st.tm, io_alias=True)
    return out_pad[:batch, :d].astype(y0.dtype)


# ---------------------------------------------------------------------------
# Parameter init + pure-JAX references (dtype-matched to the kernel path)
# ---------------------------------------------------------------------------
def init_params(key, input_dim, hidden_dim, num_layers, output_dim):
    """nn.Linear-style init; W stored (in, out) i.e. transposed vs PyTorch."""
    dims = [input_dim] + [hidden_dim] * num_layers + [output_dim]
    params = []
    for i in range(len(dims) - 1):
        fan_in, fan_out = dims[i], dims[i + 1]
        key, kw, kb = jax.random.split(key, 3)
        bound = 1.0 / jnp.sqrt(fan_in)
        w = jax.random.uniform(kw, (fan_in, fan_out), jnp.float32, -bound, bound)
        b = jax.random.uniform(kb, (1, fan_out), jnp.float32, -bound, bound)
        params.append((w, b))
    return params


def _reference_forward(y, params, matmul_dtype=_MATMUL_DTYPE):
    """Same numerics as the kernel: matmul operands in matmul_dtype, f32 accum,
    f32 bias add / tanh.  (Set matmul_dtype=f32 for the pure-f32 reference.)"""
    h = y.astype(jnp.float32)
    for l, (w, b) in enumerate(params):
        z = jnp.dot(h.astype(matmul_dtype), w.astype(matmul_dtype),
                    preferred_element_type=jnp.float32) + b
        h = jnp.tanh(z) if l < len(params) - 1 else z
    return h


def _reference_euler(y0, params, dt, num_steps):
    y = y0.astype(jnp.float32)
    for _ in range(num_steps):
        y = y + dt * _reference_forward(y, params)
    return y


if __name__ == "__main__":
    # Shapes consistent with the module: state dim = input_dim + augment_dim.
    input_dim, augment_dim = 8, 8
    this_input_dim = input_dim + augment_dim     # 16
    hidden_dim = 32
    num_layers = 3
    batch = 8

    key = jax.random.PRNGKey(0)
    key, ky = jax.random.split(key)
    y = jax.random.normal(ky, (batch, this_input_dim), jnp.float32)
    t = jnp.float32(0.0)  # unused, kept for API parity

    params = init_params(key, this_input_dim, hidden_dim, num_layers,
                         this_input_dim)
    packed = pack_params(params)  # pack once, reuse across all solver calls

    # 1) Single forward pass (the module's forward).
    out = jax.block_until_ready(ode_func_forward(t, y, packed))
    ref = _reference_forward(y, params)
    assert out.shape == (batch, this_input_dim)
    assert jnp.allclose(out, ref, atol=2e-3, rtol=2e-3), "forward mismatch"

    # 2) Padded-layout forward (external-solver path, no per-call pad/unpad).
    st = pad_state(y, packed)
    st_out = ode_func_forward_padded(t, st, packed)
    out2 = jax.block_until_ready(unpad_state(st_out, packed))
    assert jnp.allclose(out2, out, atol=1e-6), "padded-path mismatch"

    # 3) Fused solver: 32 f(y) evaluations in ONE pallas_call, weights resident.
    dt, num_steps = 0.05, 32
    y_T = jax.block_until_ready(euler_integrate(y, packed, dt, num_steps))
    ref_T = _reference_euler(y, params, dt, num_steps)
    assert y_T.shape == (batch, this_input_dim)
    assert jnp.allclose(y_T, ref_T, atol=1e-2, rtol=1e-2), "euler mismatch"

    print("KERNEL_OK")
</pallas_src>

<mosaic_0001>
module attributes {stable_mosaic.version = 11 : i64} {
  func.func @_forward_kernel(%arg0: i32, %arg1: memref<8x128xf32, #tpu.memory_space<vmem>>, %arg2: memref<4x128x128xbf16, #tpu.memory_space<vmem>>, %arg3: memref<4x1x128xf32, #tpu.memory_space<vmem>>, %arg4: memref<8x128xf32, #tpu.memory_space<vmem>>) attributes {dimension_semantics = [#tpu.dimension_semantics<parallel>], iteration_bounds = array<i64: 1>, scalar_prefetch = 0 : i64, scratch_operands = 0 : i64, tpu.core_type = #tpu.core_type<tc>, window_params = [{transform_indices = @transform_0, window_bounds = array<i64: 8, 128>}, {pipeline_mode = #tpu.pipeline_mode<synchronous>, transform_indices = @transform_1, window_bounds = array<i64: 4, 128, 128>}, {pipeline_mode = #tpu.pipeline_mode<synchronous>, transform_indices = @transform_2, window_bounds = array<i64: 4, 1, 128>}, {transform_indices = @transform_3, window_bounds = array<i64: 8, 128>}]} {
    %c0 = arith.constant 0 : index
    %c0_0 = arith.constant 0 : index
    %c0_1 = arith.constant 0 : index
    %0 = vector.load %arg3[%c0, %c0_0, %c0_1] : memref<4x1x128xf32, #tpu.memory_space<vmem>>, vector<1x1x128xf32>
    %1 = vector.shape_cast %0 : vector<1x1x128xf32> to vector<1x128xf32>
    %c1 = arith.constant 1 : index
    %c0_2 = arith.constant 0 : index
    %c0_3 = arith.constant 0 : index
    %2 = vector.load %arg3[%c1, %c0_2, %c0_3] : memref<4x1x128xf32, #tpu.memory_space<vmem>>, vector<1x1x128xf32>
    %3 = vector.shape_cast %2 : vector<1x1x128xf32> to vector<1x128xf32>
    %c2 = arith.constant 2 : index
    %c0_4 = arith.constant 0 : index
    %c0_5 = arith.constant 0 : index
    %4 = vector.load %arg3[%c2, %c0_4, %c0_5] : memref<4x1x128xf32, #tpu.memory_space<vmem>>, vector<1x1x128xf32>
    %5 = vector.shape_cast %4 : vector<1x1x128xf32> to vector<1x128xf32>
    %c3 = arith.constant 3 : index
    %c0_6 = arith.constant 0 : index
    %c0_7 = arith.constant 0 : index
    %6 = vector.load %arg3[%c3, %c0_6, %c0_7] : memref<4x1x128xf32, #tpu.memory_space<vmem>>, vector<1x1x128xf32>
    %7 = vector.shape_cast %6 : vector<1x1x128xf32> to vector<1x128xf32>
    %c0_8 = arith.constant 0 : index
    %c0_9 = arith.constant 0 : index
    %8 = vector.load %arg1[%c0_8, %c0_9] : memref<8x128xf32, #tpu.memory_space<vmem>>, vector<8x128xf32>
    %9 = arith.truncf %8 : vector<8x128xf32> to vector<8x128xbf16>
    %c0_10 = arith.constant 0 : index
    %c0_11 = arith.constant 0 : index
    %c0_12 = arith.constant 0 : index
    %10 = vector.load %arg2[%c0_10, %c0_11, %c0_12] : memref<4x128x128xbf16, #tpu.memory_space<vmem>>, vector<1x128x128xbf16>
    %11 = vector.shape_cast %10 : vector<1x128x128xbf16> to vector<128x128xbf16>
    %cst = arith.constant dense<0.000000e+00> : vector<8x128xf32>
    %12 = tpu.matmul %9, %11, %cst {dimension_numbers = #tpu.dot_dimension_numbers<[1], [0], [0], [1], [0, 0, 1, 1], [], []>} : vector<8x128xbf16>, vector<128x128xbf16>, vector<8x128xf32> -> vector<8x128xf32>
    %13 = vector.broadcast %1 : vector<1x128xf32> to vector<8x128xf32>
    %14 = arith.addf %12, %13 : vector<8x128xf32>
    %15 = math.tanh %14 : vector<8x128xf32>
    %16 = arith.truncf %15 : vector<8x128xf32> to vector<8x128xbf16>
    %c1_13 = arith.constant 1 : index
    %c0_14 = arith.constant 0 : index
    %c0_15 = arith.constant 0 : index
    %17 = vector.load %arg2[%c1_13, %c0_14, %c0_15] : memref<4x128x128xbf16, #tpu.memory_space<vmem>>, vector<1x128x128xbf16>
    %18 = vector.shape_cast %17 : vector<1x128x128xbf16> to vector<128x128xbf16>
    %cst_16 = arith.constant dense<0.000000e+00> : vector<8x128xf32>
    %19 = tpu.matmul %16, %18, %cst_16 {dimension_numbers = #tpu.dot_dimension_numbers<[1], [0], [0], [1], [0, 0, 1, 1], [], []>} : vector<8x128xbf16>, vector<128x128xbf16>, vector<8x128xf32> -> vector<8x128xf32>
    %20 = vector.broadcast %3 : vector<1x128xf32> to vector<8x128xf32>
    %21 = arith.addf %19, %20 : vector<8x128xf32>
    %22 = math.tanh %21 : vector<8x128xf32>
    %23 = arith.truncf %22 : vector<8x128xf32> to vector<8x128xbf16>
    %c2_17 = arith.constant 2 : index
    %c0_18 = arith.constant 0 : index
    %c0_19 = arith.constant 0 : index
    %24 = vector.load %arg2[%c2_17, %c0_18, %c0_19] : memref<4x128x128xbf16, #tpu.memory_space<vmem>>, vector<1x128x128xbf16>
    %25 = vector.shape_cast %24 : vector<1x128x128xbf16> to vector<128x128xbf16>
    %cst_20 = arith.constant dense<0.000000e+00> : vector<8x128xf32>
    %26 = tpu.matmul %23, %25, %cst_20 {dimension_numbers = #tpu.dot_dimension_numbers<[1], [0], [0], [1], [0, 0, 1, 1], [], []>} : vector<8x128xbf16>, vector<128x128xbf16>, vector<8x128xf32> -> vector<8x128xf32>
    %27 = vector.broadcast %5 : vector<1x128xf32> to vector<8x128xf32>
    %28 = arith.addf %26, %27 : vector<8x128xf32>
    %29 = math.tanh %28 : vector<8x128xf32>
    %30 = arith.truncf %29 : vector<8x128xf32> to vector<8x128xbf16>
    %c3_21 = arith.constant 3 : index
    %c0_22 = arith.constant 0 : index
    %c0_23 = arith.constant 0 : index
    %31 = vector.load %arg2[%c3_21, %c0_22, %c0_23] : memref<4x128x128xbf16, #tpu.memory_space<vmem>>, vector<1x128x128xbf16>
    %32 = vector.shape_cast %31 : vector<1x128x128xbf16> to vector<128x128xbf16>
    %cst_24 = arith.constant dense<0.000000e+00> : vector<8x128xf32>
    %33 = tpu.matmul %30, %32, %cst_24 {dimension_numbers = #tpu.dot_dimension_numbers<[1], [0], [0], [1], [0, 0, 1, 1], [], []>} : vector<8x128xbf16>, vector<128x128xbf16>, vector<8x128xf32> -> vector<8x128xf32>
    %34 = vector.broadcast %7 : vector<1x128xf32> to vector<8x128xf32>
    %35 = arith.addf %33, %34 : vector<8x128xf32>
    %c0_25 = arith.constant 0 : index
    %c0_26 = arith.constant 0 : index
    %36 = vector.load %arg4[%c0_25, %c0_26] : memref<8x128xf32, #tpu.memory_space<vmem>>, vector<8x128xf32>
    tpu.vector_store %arg4[%c0_25, %c0_26], %35 {strides = array<i32>} : memref<8x128xf32, #tpu.memory_space<vmem>>, vector<8x128xf32>,
    return
  }
  func.func @transform_0(%arg0: i32) -> (i32, i32) {
    %c0_i32 = arith.constant 0 : i32
    %c0_i32_0 = arith.constant 0 : i32
    return %arg0, %c0_i32 : i32, i32
  }
  func.func @transform_1(%arg0: i32) -> (i32, i32, i32) {
    %c0_i32 = arith.constant 0 : i32
    %c0_i32_0 = arith.constant 0 : i32
    %c0_i32_1 = arith.constant 0 : i32
    %c0_i32_2 = arith.constant 0 : i32
    return %c0_i32, %c0_i32_0, %c0_i32_1 : i32, i32, i32
  }
  func.func @transform_2(%arg0: i32) -> (i32, i32, i32) {
    %c0_i32 = arith.constant 0 : i32
    %c0_i32_0 = arith.constant 0 : i32
    %c0_i32_1 = arith.constant 0 : i32
    %c0_i32_2 = arith.constant 0 : i32
    return %c0_i32, %c0_i32_0, %c0_i32_1 : i32, i32, i32
  }
  func.func @transform_3(%arg0: i32) -> (i32, i32) {
    %c0_i32 = arith.constant 0 : i32
    %c0_i32_0 = arith.constant 0 : i32
    return %arg0, %c0_i32 : i32, i32
  }
}

module attributes {stable_mosaic.version = 11 : i64} {
  func.func @_forward_kernel(%arg0: i32, %arg1: memref<8x128xf32, #tpu.memory_space<vmem>>, %arg2: memref<4x128x128xbf16, #tpu.memory_space<vmem>>, %arg3: memref<4x1x128xf32, #tpu.memory_space<vmem>>, %arg4: memref<8x128xf32, #tpu.memory_space<vmem>>) attributes {dimension_semantics = [#tpu.dimension_semantics<parallel>], iteration_bounds = array<i64: 1>, scalar_prefetch = 0 : i64, scratch_operands = 0 : i64, tpu.core_type = #tpu.core_type<tc>, window_params = [{transform_indices = @transform_0, window_bounds = array<i64: 8, 128>}, {pipeline_mode = #tpu.pipeline_mode<synchronous>, transform_indices = @transform_1, window_bounds = array<i64: 4, 128, 128>}, {pipeline_mode = #tpu.pipeline_mode<synchronous>, transform_indices = @transform_2, window_bounds = array<i64: 4, 1, 128>}, {transform_indices = @transform_3, window_bounds = array<i64: 8, 128>}]} {
    %c0 = arith.constant 0 : index
    %c0_0 = arith.constant 0 : index
    %c0_1 = arith.constant 0 : index
    %0 = vector.load %arg3[%c0, %c0_0, %c0_1] : memref<4x1x128xf32, #tpu.memory_space<vmem>>, vector<1x1x128xf32>
    %1 = vector.shape_cast %0 : vector<1x1x128xf32> to vector<1x128xf32>
    %c1 = arith.constant 1 : index
    %c0_2 = arith.constant 0 : index
    %c0_3 = arith.constant 0 : index
    %2 = vector.load %arg3[%c1, %c0_2, %c0_3] : memref<4x1x128xf32, #tpu.memory_space<vmem>>, vector<1x1x128xf32>
    %3 = vector.shape_cast %2 : vector<1x1x128xf32> to vector<1x128xf32>
    %c2 = arith.constant 2 : index
    %c0_4 = arith.constant 0 : index
    %c0_5 = arith.constant 0 : index
    %4 = vector.load %arg3[%c2, %c0_4, %c0_5] : memref<4x1x128xf32, #tpu.memory_space<vmem>>, vector<1x1x128xf32>
    %5 = vector.shape_cast %4 : vector<1x1x128xf32> to vector<1x128xf32>
    %c3 = arith.constant 3 : index
    %c0_6 = arith.constant 0 : index
    %c0_7 = arith.constant 0 : index
    %6 = vector.load %arg3[%c3, %c0_6, %c0_7] : memref<4x1x128xf32, #tpu.memory_space<vmem>>, vector<1x1x128xf32>
    %7 = vector.shape_cast %6 : vector<1x1x128xf32> to vector<1x128xf32>
    %c0_8 = arith.constant 0 : index
    %c0_9 = arith.constant 0 : index
    %8 = vector.load %arg1[%c0_8, %c0_9] : memref<8x128xf32, #tpu.memory_space<vmem>>, vector<8x128xf32>
    %9 = arith.truncf %8 : vector<8x128xf32> to vector<8x128xbf16>
    %c0_10 = arith.constant 0 : index
    %c0_11 = arith.constant 0 : index
    %c0_12 = arith.constant 0 : index
    %10 = vector.load %arg2[%c0_10, %c0_11, %c0_12] : memref<4x128x128xbf16, #tpu.memory_space<vmem>>, vector<1x128x128xbf16>
    %11 = vector.shape_cast %10 : vector<1x128x128xbf16> to vector<128x128xbf16>
    %cst = arith.constant dense<0.000000e+00> : vector<8x128xf32>
    %12 = tpu.matmul %9, %11, %cst {dimension_numbers = #tpu.dot_dimension_numbers<[1], [0], [0], [1], [0, 0, 1, 1], [], []>} : vector<8x128xbf16>, vector<128x128xbf16>, vector<8x128xf32> -> vector<8x128xf32>
    %13 = vector.broadcast %1 : vector<1x128xf32> to vector<8x128xf32>
    %14 = arith.addf %12, %13 : vector<8x128xf32>
    %15 = math.tanh %14 : vector<8x128xf32>
    %16 = arith.truncf %15 : vector<8x128xf32> to vector<8x128xbf16>
    %c1_13 = arith.constant 1 : index
    %c0_14 = arith.constant 0 : index
    %c0_15 = arith.constant 0 : index
    %17 = vector.load %arg2[%c1_13, %c0_14, %c0_15] : memref<4x128x128xbf16, #tpu.memory_space<vmem>>, vector<1x128x128xbf16>
    %18 = vector.shape_cast %17 : vector<1x128x128xbf16> to vector<128x128xbf16>
    %cst_16 = arith.constant dense<0.000000e+00> : vector<8x128xf32>
    %19 = tpu.matmul %16, %18, %cst_16 {dimension_numbers = #tpu.dot_dimension_numbers<[1], [0], [0], [1], [0, 0, 1, 1], [], []>} : vector<8x128xbf16>, vector<128x128xbf16>, vector<8x128xf32> -> vector<8x128xf32>
    %20 = vector.broadcast %3 : vector<1x128xf32> to vector<8x128xf32>
    %21 = arith.addf %19, %20 : vector<8x128xf32>
    %22 = math.tanh %21 : vector<8x128xf32>
    %23 = arith.truncf %22 : vector<8x128xf32> to vector<8x128xbf16>
    %c2_17 = arith.constant 2 : index
    %c0_18 = arith.constant 0 : index
    %c0_19 = arith.constant 0 : index
    %24 = vector.load %arg2[%c2_17, %c0_18, %c0_19] : memref<4x128x128xbf16, #tpu.memory_space<vmem>>, vector<1x128x128xbf16>
    %25 = vector.shape_cast %24 : vector<1x128x128xbf16> to vector<128x128xbf16>
    %cst_20 = arith.constant dense<0.000000e+00> : vector<8x128xf32>
    %26 = tpu.matmul %23, %25, %cst_20 {dimension_numbers = #tpu.dot_dimension_numbers<[1], [0], [0], [1], [0, 0, 1, 1], [], []>} : vector<8x128xbf16>, vector<128x128xbf16>, vector<8x128xf32> -> vector<8x128xf32>
    %27 = vector.broadcast %5 : vector<1x128xf32> to vector<8x128xf32>
    %28 = arith.addf %26, %27 : vector<8x128xf32>
    %29 = math.tanh %28 : vector<8x128xf32>
    %30 = arith.truncf %29 : vector<8x128xf32> to vector<8x128xbf16>
    %c3_21 = arith.constant 3 : index
    %c0_22 = arith.constant 0 : index
    %c0_23 = arith.constant 0 : index
    %31 = vector.load %arg2[%c3_21, %c0_22, %c0_23] : memref<4x128x128xbf16, #tpu.memory_space<vmem>>, vector<1x128x128xbf16>
    %32 = vector.shape_cast %31 : vector<1x128x128xbf16> to vector<128x128xbf16>
    %cst_24 = arith.constant dense<0.000000e+00> : vector<8x128xf32>
    %33 = tpu.matmul %30, %32, %cst_24 {dimension_numbers = #tpu.dot_dimension_numbers<[1], [0], [0], [1], [0, 0, 1, 1], [], []>} : vector<8x128xbf16>, vector<128x128xbf16>, vector<8x128xf32> -> vector<8x128xf32>
    %34 = vector.broadcast %7 : vector<1x128xf32> to vector<8x128xf32>
    %35 = arith.addf %33, %34 : vector<8x128xf32>
    %c0_25 = arith.constant 0 : index
    %c0_26 = arith.constant 0 : index
    %36 = vector.load %arg4[%c0_25, %c0_26] : memref<8x128xf32, #tpu.memory_space<vmem>>, vector<8x128xf32>
    tpu.vector_store %arg4[%c0_25, %c0_26], %35 {strides = array<i32>} : memref<8x128xf32, #tpu.memory_space<vmem>>, vector<8x128xf32>,
    return
  }
  func.func @transform_0(%arg0: i32) -> (i32, i32) {
    %c0_i32 = arith.constant 0 : i32
    %c0_i32_0 = arith.constant 0 : i32
    return %arg0, %c0_i32 : i32, i32
  }
  func.func @transform_1(%arg0: i32) -> (i32, i32, i32) {
    %c0_i32 = arith.constant 0 : i32
    %c0_i32_0 = arith.constant 0 : i32
    %c0_i32_1 = arith.constant 0 : i32
    %c0_i32_2 = arith.constant 0 : i32
    return %c0_i32, %c0_i32_0, %c0_i32_1 : i32, i32, i32
  }
  func.func @transform_2(%arg0: i32) -> (i32, i32, i32) {
    %c0_i32 = arith.constant 0 : i32
    %c0_i32_0 = arith.constant 0 : i32
    %c0_i32_1 = arith.constant 0 : i32
    %c0_i32_2 = arith.constant 0 : i32
    return %c0_i32, %c0_i32_0, %c0_i32_1 : i32, i32, i32
  }
  func.func @transform_3(%arg0: i32) -> (i32, i32) {
    %c0_i32 = arith.constant 0 : i32
    %c0_i32_0 = arith.constant 0 : i32
    return %arg0, %c0_i32 : i32, i32
  }
}

</mosaic_0001>

<llo_original>
// kernel: tpu_custom_call.1
$region0: #{tpu_custom_call.1}
  #allocation0 [shape = 'u32[]', space=smem, size = 0x4, offset = 0x4, fixed_abs, tag = 'smem constant byte address 0x4 - core index']
  #allocation1 [shape = 'u32[144,128]{1,0:T(1,128)}', space=vmem, size = 0x12000, scoped, tag = 'internal scratch']
  %s0 = inlined_call_operand.hbm [shape: f32[8,128], index: 0, kind: input, shape index: {}]
  %s1 = inlined_call_operand.hbm [shape: bf16[4,128,128], index: 1, kind: input, shape index: {}]
  %s2 = inlined_call_operand.hbm [shape: f32[4,1,128], index: 2, kind: input, shape index: {}]
  %s3 = inlined_call_operand.hbm [shape: f32[8,128], index: 3, kind: output, shape index: {}]
  %s4 = sld [smem:[#allocation0]]
  $region34: #{tpu_custom_call.1} parent=0
    _
  %s6 = ssub.s32 1, %s4
  %s7 = scalar_select 0, %s6, %s4
  $region1: #{tpu_custom_call.1} parent=0
    #allocation2 [shape = 'u8[4096]{0}', space=vmem, size = 0x1000, scoped, tag = 'input window, operand 0, single buffered']
    #allocation3 [shape = 's32[1]{0}', space=sflag, size = 0x4, scoped, tag = 'scoped memory for tpu_custom_call.1']
    #allocation4 [shape = 's32[1]{0}', space=sflag, size = 0x4, scoped, tag = 'scoped memory for tpu_custom_call.1']
    #allocation5 [shape = 'u8[131072]{0}', space=vmem, size = 0x20000, scoped, tag = 'input window, operand 1, single buffered']
    #allocation6 [shape = 's32[1]{0}', space=sflag, size = 0x4, scoped, tag = 'scoped memory for tpu_custom_call.1']
    #allocation7 [shape = 'u8[2048]{0}', space=vmem, size = 0x800, scoped, tag = 'input window, operand 2, single buffered']
    #allocation8 [shape = 'u8[4096]{0}', space=vmem, size = 0x1000, scoped, tag = 'output window, operand 0, single buffered']
    %8 = vsyncpa [#allocation3], 0
    %9 = vsyncpa [#allocation6], 0
    %10 = vsyncpa [#allocation4], 0
    // Predicated region
    $region2: #{tpu_custom_call.1} parent=1 // pred_check
      _
    $region3: #{tpu_custom_call.1} parent=1 // pred_check_branch
      %12 = sbr.rel (0) target = $region5
    $region4: #{tpu_custom_call.1} parent=1 // pred_region
      %s14 = ssub.s32 128, 128
      %15 = vsyncadd [#allocation3], %s14
      %s17 = sshll.u32 [#allocation2], 4
      %s18 = int_to_ptr.vmem [resolvable:$true] %s17
      %20 = dma.hbm_to_vmem [thread:$0]  %s0, 128, %s18, [#allocation3]
    $region5: #{tpu_custom_call.1} parent=1 // pred_fallthru
      _
    // Predicated region
    $region6: #{tpu_custom_call.1} parent=1 // pred_check
      _
    $region7: #{tpu_custom_call.1} parent=1 // pred_check_branch
      %22 = sbr.rel (0) target = $region9
    $region8: #{tpu_custom_call.1} parent=1 // pred_region
      %s24 = ssub.s32 4096, 4096
      %25 = vsyncadd [#allocation6], %s24
      %s26 = sshll.u32 [#allocation5], 4
      %s27 = int_to_ptr.vmem [resolvable:$true] %s26
      %32 = dma.hbm_to_vmem [thread:$0]  %s1, 4096, %s27, [#allocation6], 64, 64, 4
    $region9: #{tpu_custom_call.1} parent=1 // pred_fallthru
      _
    // Predicated region
    $region10: #{tpu_custom_call.1} parent=1 // pred_check
      _
    $region11: #{tpu_custom_call.1} parent=1 // pred_check_branch
      %34 = sbr.rel (0) target = $region13
    $region12: #{tpu_custom_call.1} parent=1 // pred_region
      %s36 = ssub.s32 64, 64
      %37 = vsyncadd [#allocation6], %s36
      %s38 = sshll.u32 [#allocation7], 4
      %s39 = int_to_ptr.vmem [resolvable:$true] %s38
      %44 = dma.hbm_to_vmem [thread:$0]  %s2, 64, %s39, [#allocation6], 16, 16, 1
    $region13: #{tpu_custom_call.1} parent=1 // pred_fallthru
      _
    // Predicated region
    $region14: #{tpu_custom_call.1} parent=1 // pred_check
      _
    $region15: #{tpu_custom_call.1} parent=1 // pred_check_branch
      %46 = sbr.rel (0) target = $region17
    $region16: #{tpu_custom_call.1} parent=1 // pred_region
      %47 = dma.done [#allocation3], 128
    $region17: #{tpu_custom_call.1} parent=1 // pred_fallthru
      _
    // Predicated region
    $region18: #{tpu_custom_call.1} parent=1 // pred_check
      _
    $region19: #{tpu_custom_call.1} parent=1 // pred_check_branch
      %49 = sbr.rel (0) target = $region21
    $region20: #{tpu_custom_call.1} parent=1 // pred_region
      %50 = dma.done [#allocation6], 4096
    $region21: #{tpu_custom_call.1} parent=1 // pred_fallthru
      _
    // Predicated region
    $region22: #{tpu_custom_call.1} parent=1 // pred_check
      _
    $region23: #{tpu_custom_call.1} parent=1 // pred_check_branch
      %52 = sbr.rel (0) target = $region25
    $region24: #{tpu_custom_call.1} parent=1 // pred_region
      %53 = dma.done [#allocation6], 64
    $region25: #{tpu_custom_call.1} parent=1 // pred_fallthru
      _
    %v55 = vld [vmem:[#allocation7] sm:$0x1]
    %s56 = scalar_lea.vmem [#allocation7], 1
    %v57 = vld [vmem:[%s56] sm:$0x1]
    %s58 = scalar_lea.vmem [#allocation7], 2
    %v59 = vld [vmem:[%s58] sm:$0x1]
    %s60 = scalar_lea.vmem [#allocation7], 3
    %v61 = vld [vmem:[%s60] sm:$0x1]
    %v62 = vld [vmem:[#allocation2] sm:$0xff]
    %v63 = vpack.c.bf16 %v62, %v62
    %v64 = vld [vmem:[#allocation5] sm:$0xf]
    %v65 = vld [vmem:[#allocation5 + $0x4] sm:$0xf]
    %v66 = vld [vmem:[#allocation5 + $0x8] sm:$0xf]
    %v67 = vld [vmem:[#allocation5 + $0xc] sm:$0xf]
    %v68 = vld [vmem:[#allocation5 + $0x10] sm:$0xf]
    %v69 = vld [vmem:[#allocation5 + $0x14] sm:$0xf]
    %v70 = vld [vmem:[#allocation5 + $0x18] sm:$0xf]
    %v71 = vld [vmem:[#allocation5 + $0x1c] sm:$0xf]
    %v72 = vld [vmem:[#allocation5 + $0x20] sm:$0xf]
    %v73 = vld [vmem:[#allocation5 + $0x24] sm:$0xf]
    %v74 = vld [vmem:[#allocation5 + $0x28] sm:$0xf]
    %v75 = vld [vmem:[#allocation5 + $0x2c] sm:$0xf]
    %v76 = vld [vmem:[#allocation5 + $0x30] sm:$0xf]
    %v77 = vld [vmem:[#allocation5 + $0x34] sm:$0xf]
    %v78 = vld [vmem:[#allocation5 + $0x38] sm:$0xf]
    %v79 = vld [vmem:[#allocation5 + $0x3c] sm:$0xf]
    %v81 = vlaneseq
    %v82 = vshrl.u32 %v81, 7
    %v83 = vsub.s32 0, %v82
    %v84 = vrot.slane %v55, %v83
    %v102 = vunpack.c.l.b16 %v64
    %v103 = vunpack.c.l.b16 %v65
    %v104 = vunpack.c.l.b16 %v66
    %v105 = vunpack.c.l.b16 %v67
    %v106 = vunpack.c.l.b16 %v68
    %v107 = vunpack.c.l.b16 %v69
    %v108 = vunpack.c.l.b16 %v70
    %v109 = vunpack.c.l.b16 %v71
    %v110 = vunpack.c.l.b16 %v72
    %v111 = vunpack.c.l.b16 %v73
    %v112 = vunpack.c.l.b16 %v74
    %v113 = vunpack.c.l.b16 %v75
    %v114 = vunpack.c.l.b16 %v76
    %v115 = vunpack.c.l.b16 %v77
    %v116 = vunpack.c.l.b16 %v78
    %v117 = vunpack.c.l.b16 %v79
    %v118 = vpack.c.b16 %v103, %v102
    %v119 = vpack.c.b16 %v105, %v104
    %v120 = vpack.c.b16 %v107, %v106
    %v121 = vpack.c.b16 %v109, %v108
    %v122 = vpack.c.b16 %v111, %v110
    %v123 = vpack.c.b16 %v113, %v112
    %v124 = vpack.c.b16 %v115, %v114
    %v125 = vpack.c.b16 %v117, %v116
    %134 = vmatprep.subr.bf16.mxu0 0
    %135 = vmatpush1.bf16.msra.mxu0 %v125
    %136 = vmatprep.subr.bf16.mxu0 0
    %137 = vmatpush1.bf16.msra.mxu0 %v124
    %138 = vmatprep.subr.bf16.mxu0 0
    %139 = vmatpush1.bf16.msra.mxu0 %v123
    %140 = vmatprep.subr.bf16.mxu0 0
    %141 = vmatpush1.bf16.msra.mxu0 %v122
    %142 = vmatprep.subr.bf16.mxu0 0
    %143 = vmatpush1.bf16.msra.mxu0 %v121
    %144 = vmatprep.subr.bf16.mxu0 0
    %145 = vmatpush1.bf16.msra.mxu0 %v120
    %146 = vmatprep.subr.bf16.mxu0 0
    %147 = vmatpush1.bf16.msra.mxu0 %v119
    %148 = vmatprep.subr.bf16.mxu0 0
    %149 = vmatpush1.bf16.msra.mxu0 %v118
    %150 = vmatprep.subr.bf16.mxu0 0
    %151 = vmatpush2.bf16.msra.mxu0 0
    %152 = vmatprep.subr.bf16.mxu0 0
    %153 = vmatpush2.bf16.msra.mxu0 0
    %154 = vmatprep.subr.bf16.mxu0 0
    %155 = vmatpush2.bf16.msra.mxu0 0
    %156 = vmatprep.subr.bf16.mxu0 0
    %157 = vmatpush2.bf16.msra.mxu0 0
    %158 = vmatprep.subr.bf16.mxu0 0
    %159 = vmatpush2.bf16.msra.mxu0 0
    %160 = vmatprep.subr.bf16.mxu0 0
    %161 = vmatpush2.bf16.msra.mxu0 0
    %162 = vmatprep.subr.bf16.mxu0 0
    %163 = vmatpush2.bf16.msra.mxu0 0
    %164 = vmatprep.subr.bf16.mxu0 0
    %165 = vmatpush2.bf16.msra.mxu0 0
    %166 = vmatprep.mubr.bf16.mxu0 0
    %167 = vmatmul.mubr.bf16.gmra.mxu0 %v63
    %v168 = vpop.f32.mrf.mxu0
    %v169 = vadd.f32 %v84, %v168
    %v170 = vpop.f32.mrf.mxu0
    %v171 = vpop.f32.mrf.mxu0
    %v172 = vpop.f32.mrf.mxu0
    %173 = vdwg.mxu0
    %v174 = vtanh.pop %v169
    %v175 = vpack.c.bf16 %v174, %v174
    %s176 = scalar_lea.vmem [#allocation5], 64
    %v177 = vld [vmem:[%s176] sm:$0xf]
    %v178 = vld [vmem:[%s176 + $0x4] sm:$0xf]
    %v179 = vld [vmem:[%s176 + $0x8] sm:$0xf]
    %v180 = vld [vmem:[%s176 + $0xc] sm:$0xf]
    %v181 = vld [vmem:[%s176 + $0x10] sm:$0xf]
    %v182 = vld [vmem:[%s176 + $0x14] sm:$0xf]
    %v183 = vld [vmem:[%s176 + $0x18] sm:$0xf]
    %v184 = vld [vmem:[%s176 + $0x1c] sm:$0xf]
    %v185 = vld [vmem:[%s176 + $0x20] sm:$0xf]
    %v186 = vld [vmem:[%s176 + $0x24] sm:$0xf]
    %v187 = vld [vmem:[%s176 + $0x28] sm:$0xf]
    %v188 = vld [vmem:[%s176 + $0x2c] sm:$0xf]
    %v189 = vld [vmem:[%s176 + $0x30] sm:$0xf]
    %v190 = vld [vmem:[%s176 + $0x34] sm:$0xf]
    %v191 = vld [vmem:[%s176 + $0x38] sm:$0xf]
    %v192 = vld [vmem:[%s176 + $0x3c] sm:$0xf]
    %v194 = vlaneseq
    %v195 = vshrl.u32 %v194, 7
    %v196 = vsub.s32 0, %v195
    %v197 = vrot.slane %v57, %v196
    %v215 = vunpack.c.l.b16 %v177
    %v216 = vunpack.c.l.b16 %v178
    %v217 = vunpack.c.l.b16 %v179
    %v218 = vunpack.c.l.b16 %v180
    %v219 = vunpack.c.l.b16 %v181
    %v220 = vunpack.c.l.b16 %v182
    %v221 = vunpack.c.l.b16 %v183
    %v222 = vunpack.c.l.b16 %v184
    %v223 = vunpack.c.l.b16 %v185
    %v224 = vunpack.c.l.b16 %v186
    %v225 = vunpack.c.l.b16 %v187
    %v226 = vunpack.c.l.b16 %v188
    %v227 = vunpack.c.l.b16 %v189
    %v228 = vunpack.c.l.b16 %v190
    %v229 = vunpack.c.l.b16 %v191
    %v230 = vunpack.c.l.b16 %v192
    %v231 = vpack.c.b16 %v216, %v215
    %v232 = vpack.c.b16 %v218, %v217
    %v233 = vpack.c.b16 %v220, %v219
    %v234 = vpack.c.b16 %v222, %v221
    %v235 = vpack.c.b16 %v224, %v223
    %v236 = vpack.c.b16 %v226, %v225
    %v237 = vpack.c.b16 %v228, %v227
    %v238 = vpack.c.b16 %v230, %v229
    %247 = vmatprep.subr.bf16.mxu0 0
    %248 = vmatpush1.bf16.msra.mxu0 %v238
    %249 = vmatprep.subr.bf16.mxu0 0
    %250 = vmatpush1.bf16.msra.mxu0 %v237
    %251 = vmatprep.subr.bf16.mxu0 0
    %252 = vmatpush1.bf16.msra.mxu0 %v236
    %253 = vmatprep.subr.bf16.mxu0 0
    %254 = vmatpush1.bf16.msra.mxu0 %v235
    %255 = vmatprep.subr.bf16.mxu0 0
    %256 = vmatpush1.bf16.msra.mxu0 %v234
    %257 = vmatprep.subr.bf16.mxu0 0
    %258 = vmatpush1.bf16.msra.mxu0 %v233
    %259 = vmatprep.subr.bf16.mxu0 0
    %260 = vmatpush1.bf16.msra.mxu0 %v232
    %261 = vmatprep.subr.bf16.mxu0 0
    %262 = vmatpush1.bf16.msra.mxu0 %v231
    %263 = vmatprep.subr.bf16.mxu0 0
    %264 = vmatpush2.bf16.msra.mxu0 0
    %265 = vmatprep.subr.bf16.mxu0 0
    %266 = vmatpush2.bf16.msra.mxu0 0
    %267 = vmatprep.subr.bf16.mxu0 0
    %268 = vmatpush2.bf16.msra.mxu0 0
    %269 = vmatprep.subr.bf16.mxu0 0
    %270 = vmatpush2.bf16.msra.mxu0 0
    %271 = vmatprep.subr.bf16.mxu0 0
    %272 = vmatpush2.bf16.msra.mxu0 0
    %273 = vmatprep.subr.bf16.mxu0 0
    %274 = vmatpush2.bf16.msra.mxu0 0
    %275 = vmatprep.subr.bf16.mxu0 0
    %276 = vmatpush2.bf16.msra.mxu0 0
    %277 = vmatprep.subr.bf16.mxu0 0
    %278 = vmatpush2.bf16.msra.mxu0 0
    %279 = vmatprep.mubr.bf16.mxu0 0
    %280 = vmatmul.mubr.bf16.gmra.mxu0 %v175
    %v281 = vpop.f32.mrf.mxu0
    %v282 = vadd.f32 %v197, %v281
    %v283 = vpop.f32.mrf.mxu0
    %v284 = vpop.f32.mrf.mxu0
    %v285 = vpop.f32.mrf.mxu0
    %286 = vdwg.mxu0
    %v287 = vtanh.pop %v282
    %v288 = vpack.c.bf16 %v287, %v287
    %s289 = scalar_lea.vmem [#allocation5], 128
    %v290 = vld [vmem:[%s289] sm:$0xf]
    %v291 = vld [vmem:[%s289 + $0x4] sm:$0xf]
    %v292 = vld [vmem:[%s289 + $0x8] sm:$0xf]
    %v293 = vld [vmem:[%s289 + $0xc] sm:$0xf]
    %v294 = vld [vmem:[%s289 + $0x10] sm:$0xf]
    %v295 = vld [vmem:[%s289 + $0x14] sm:$0xf]
    %v296 = vld [vmem:[%s289 + $0x18] sm:$0xf]
    %v297 = vld [vmem:[%s289 + $0x1c] sm:$0xf]
    %v298 = vld [vmem:[%s289 + $0x20] sm:$0xf]
    %v299 = vld [vmem:[%s289 + $0x24] sm:$0xf]
    %v300 = vld [vmem:[%s289 + $0x28] sm:$0xf]
    %v301 = vld [vmem:[%s289 + $0x2c] sm:$0xf]
    %v302 = vld [vmem:[%s289 + $0x30] sm:$0xf]
    %v303 = vld [vmem:[%s289 + $0x34] sm:$0xf]
    %v304 = vld [vmem:[%s289 + $0x38] sm:$0xf]
    %v305 = vld [vmem:[%s289 + $0x3c] sm:$0xf]
    %v307 = vlaneseq
    %v308 = vshrl.u32 %v307, 7
    %v309 = vsub.s32 0, %v308
    %v310 = vrot.slane %v59, %v309
    %v328 = vunpack.c.l.b16 %v290
    %v329 = vunpack.c.l.b16 %v291
    %v330 = vunpack.c.l.b16 %v292
    %v331 = vunpack.c.l.b16 %v293
    %v332 = vunpack.c.l.b16 %v294
    %v333 = vunpack.c.l.b16 %v295
    %v334 = vunpack.c.l.b16 %v296
    %v335 = vunpack.c.l.b16 %v297
    %v336 = vunpack.c.l.b16 %v298
    %v337 = vunpack.c.l.b16 %v299
    %v338 = vunpack.c.l.b16 %v300
    %v339 = vunpack.c.l.b16 %v301
    %v340 = vunpack.c.l.b16 %v302
    %v341 = vunpack.c.l.b16 %v303
    %v342 = vunpack.c.l.b16 %v304
    %v343 = vunpack.c.l.b16 %v305
    %v344 = vpack.c.b16 %v329, %v328
    %v345 = vpack.c.b16 %v331, %v330
    %v346 = vpack.c.b16 %v333, %v332
    %v347 = vpack.c.b16 %v335, %v334
    %v348 = vpack.c.b16 %v337, %v336
    %v349 = vpack.c.b16 %v339, %v338
    %v350 = vpack.c.b16 %v341, %v340
    %v351 = vpack.c.b16 %v343, %v342
    %360 = vmatprep.subr.bf16.mxu0 0
    %361 = vmatpush1.bf16.msra.mxu0 %v351
    %362 = vmatprep.subr.bf16.mxu0 0
    %363 = vmatpush1.bf16.msra.mxu0 %v350
    %364 = vmatprep.subr.bf16.mxu0 0
    %365 = vmatpush1.bf16.msra.mxu0 %v349
    %366 = vmatprep.subr.bf16.mxu0 0
    %367 = vmatpush1.bf16.msra.mxu0 %v348
    %368 = vmatprep.subr.bf16.mxu0 0
    %369 = vmatpush1.bf16.msra.mxu0 %v347
    %370 = vmatprep.subr.bf16.mxu0 0
    %371 = vmatpush1.bf16.msra.mxu0 %v346
    %372 = vmatprep.subr.bf16.mxu0 0
    %373 = vmatpush1.bf16.msra.mxu0 %v345
    %374 = vmatprep.subr.bf16.mxu0 0
    %375 = vmatpush1.bf16.msra.mxu0 %v344
    %376 = vmatprep.subr.bf16.mxu0 0
    %377 = vmatpush2.bf16.msra.mxu0 0
    %378 = vmatprep.subr.bf16.mxu0 0
    %379 = vmatpush2.bf16.msra.mxu0 0
    %380 = vmatprep.subr.bf16.mxu0 0
    %381 = vmatpush2.bf16.msra.mxu0 0
    %382 = vmatprep.subr.bf16.mxu0 0
    %383 = vmatpush2.bf16.msra.mxu0 0
    %384 = vmatprep.subr.bf16.mxu0 0
    %385 = vmatpush2.bf16.msra.mxu0 0
    %386 = vmatprep.subr.bf16.mxu0 0
    %387 = vmatpush2.bf16.msra.mxu0 0
    %388 = vmatprep.subr.bf16.mxu0 0
    %389 = vmatpush2.bf16.msra.mxu0 0
    %390 = vmatprep.subr.bf16.mxu0 0
    %391 = vmatpush2.bf16.msra.mxu0 0
    %392 = vmatprep.mubr.bf16.mxu0 0
    %393 = vmatmul.mubr.bf16.gmra.mxu0 %v288
    %v394 = vpop.f32.mrf.mxu0
    %v395 = vadd.f32 %v310, %v394
    %v396 = vpop.f32.mrf.mxu0
    %v397 = vpop.f32.mrf.mxu0
    %v398 = vpop.f32.mrf.mxu0
    %399 = vdwg.mxu0
    %v400 = vtanh.pop %v395
    %v401 = vpack.c.bf16 %v400, %v400
    %s402 = scalar_lea.vmem [#allocation5], 192
    %v403 = vld [vmem:[%s402] sm:$0xf]
    %v404 = vld [vmem:[%s402 + $0x4] sm:$0xf]
    %v405 = vld [vmem:[%s402 + $0x8] sm:$0xf]
    %v406 = vld [vmem:[%s402 + $0xc] sm:$0xf]
    %v407 = vld [vmem:[%s402 + $0x10] sm:$0xf]
    %v408 = vld [vmem:[%s402 + $0x14] sm:$0xf]
    %v409 = vld [vmem:[%s402 + $0x18] sm:$0xf]
    %v410 = vld [vmem:[%s402 + $0x1c] sm:$0xf]
    %v411 = vld [vmem:[%s402 + $0x20] sm:$0xf]
    %v412 = vld [vmem:[%s402 + $0x24] sm:$0xf]
    %v413 = vld [vmem:[%s402 + $0x28] sm:$0xf]
    %v414 = vld [vmem:[%s402 + $0x2c] sm:$0xf]
    %v415 = vld [vmem:[%s402 + $0x30] sm:$0xf]
    %v416 = vld [vmem:[%s402 + $0x34] sm:$0xf]
    %v417 = vld [vmem:[%s402 + $0x38] sm:$0xf]
    %v418 = vld [vmem:[%s402 + $0x3c] sm:$0xf]
    %v420 = vlaneseq
    %v421 = vshrl.u32 %v420, 7
    %v422 = vsub.s32 0, %v421
    %v423 = vrot.slane %v61, %v422
    %v441 = vunpack.c.l.b16 %v403
    %v442 = vunpack.c.l.b16 %v404
    %v443 = vunpack.c.l.b16 %v405
    %v444 = vunpack.c.l.b16 %v406
    %v445 = vunpack.c.l.b16 %v407
    %v446 = vunpack.c.l.b16 %v408
    %v447 = vunpack.c.l.b16 %v409
    %v448 = vunpack.c.l.b16 %v410
    %v449 = vunpack.c.l.b16 %v411
    %v450 = vunpack.c.l.b16 %v412
    %v451 = vunpack.c.l.b16 %v413
    %v452 = vunpack.c.l.b16 %v414
    %v453 = vunpack.c.l.b16 %v415
    %v454 = vunpack.c.l.b16 %v416
    %v455 = vunpack.c.l.b16 %v417
    %v456 = vunpack.c.l.b16 %v418
    %v457 = vpack.c.b16 %v442, %v441
    %v458 = vpack.c.b16 %v444, %v443
    %v459 = vpack.c.b16 %v446, %v445
    %v460 = vpack.c.b16 %v448, %v447
    %v461 = vpack.c.b16 %v450, %v449
    %v462 = vpack.c.b16 %v452, %v451
    %v463 = vpack.c.b16 %v454, %v453
    %v464 = vpack.c.b16 %v456, %v455
    %473 = vmatprep.subr.bf16.mxu0 0
    %474 = vmatpush1.bf16.msra.mxu0 %v464
    %475 = vmatprep.subr.bf16.mxu0 0
    %476 = vmatpush1.bf16.msra.mxu0 %v463
    %477 = vmatprep.subr.bf16.mxu0 0
    %478 = vmatpush1.bf16.msra.mxu0 %v462
    %479 = vmatprep.subr.bf16.mxu0 0
    %480 = vmatpush1.bf16.msra.mxu0 %v461
    %481 = vmatprep.subr.bf16.mxu0 0
    %482 = vmatpush1.bf16.msra.mxu0 %v460
    %483 = vmatprep.subr.bf16.mxu0 0
    %484 = vmatpush1.bf16.msra.mxu0 %v459
    %485 = vmatprep.subr.bf16.mxu0 0
    %486 = vmatpush1.bf16.msra.mxu0 %v458
    %487 = vmatprep.subr.bf16.mxu0 0
    %488 = vmatpush1.bf16.msra.mxu0 %v457
    %489 = vmatprep.subr.bf16.mxu0 0
    %490 = vmatpush2.bf16.msra.mxu0 0
    %491 = vmatprep.subr.bf16.mxu0 0
    %492 = vmatpush2.bf16.msra.mxu0 0
    %493 = vmatprep.subr.bf16.mxu0 0
    %494 = vmatpush2.bf16.msra.mxu0 0
    %495 = vmatprep.subr.bf16.mxu0 0
    %496 = vmatpush2.bf16.msra.mxu0 0
    %497 = vmatprep.subr.bf16.mxu0 0
    %498 = vmatpush2.bf16.msra.mxu0 0
    %499 = vmatprep.subr.bf16.mxu0 0
    %500 = vmatpush2.bf16.msra.mxu0 0
    %501 = vmatprep.subr.bf16.mxu0 0
    %502 = vmatpush2.bf16.msra.mxu0 0
    %503 = vmatprep.subr.bf16.mxu0 0
    %504 = vmatpush2.bf16.msra.mxu0 0
    %505 = vmatprep.mubr.bf16.mxu0 0
    %506 = vmatmul.mubr.bf16.gmra.mxu0 %v401
    %v507 = vpop.f32.mrf.mxu0
    %v508 = vadd.f32 %v423, %v507
    %v509 = vpop.f32.mrf.mxu0
    %v510 = vpop.f32.mrf.mxu0
    %v511 = vpop.f32.mrf.mxu0
    %512 = vdwg.mxu0
    %513 = vst [vmem:[#allocation8] sm:$0xff] %v508
    // Predicated region
    $region26: #{tpu_custom_call.1} parent=1 // pred_check
      _
    $region27: #{tpu_custom_call.1} parent=1 // pred_check_branch
      %515 = sbr.rel (0) target = $region29
    $region28: #{tpu_custom_call.1} parent=1 // pred_region
      %s517 = ssub.s32 128, 128
      %518 = vsyncadd [#allocation4], %s517
      %s520 = sshll.u32 [#allocation8], 4
      %s521 = int_to_ptr.vmem [resolvable:$true] %s520
      %523 = dma.vmem_to_hbm [thread:$0]  %s521, 128, %s3, [#allocation4]
    $region29: #{tpu_custom_call.1} parent=1 // pred_fallthru
      _
    // Predicated region
    $region30: #{tpu_custom_call.1} parent=1 // pred_check
      _
    $region31: #{tpu_custom_call.1} parent=1 // pred_check_branch
      %525 = sbr.rel (0) target = $region33
    $region32: #{tpu_custom_call.1} parent=1 // pred_region
      %526 = dma.done [#allocation4], 128
    $region33: #{tpu_custom_call.1} parent=1 // pred_fallthru
      _
    %527 = vsyncpa [#allocation3], 1
    %528 = vsyncpa [#allocation6], 1
    %529 = vsyncpa [#allocation4], 1

// kernel: tpu_custom_call.1
$region0: #{tpu_custom_call.1}
  #allocation0 [shape = 'u32[]', space=smem, size = 0x4, offset = 0x4, fixed_abs, tag = 'smem constant byte address 0x4 - core index']
  #allocation1 [shape = 'u32[144,128]{1,0:T(1,128)}', space=vmem, size = 0x12000, scoped, tag = 'internal scratch']
  %s0 = inlined_call_operand.hbm [shape: f32[8,128], index: 0, kind: input, shape index: {}]
  %s1 = inlined_call_operand.hbm [shape: bf16[4,128,128], index: 1, kind: input, shape index: {}]
  %s2 = inlined_call_operand.hbm [shape: f32[4,1,128], index: 2, kind: input, shape index: {}]
  %s3 = inlined_call_operand.hbm [shape: f32[8,128], index: 3, kind: output, shape index: {}]
  %s4 = sld [smem:[#allocation0]]
  $region34: #{tpu_custom_call.1} parent=0
    _
  %s6 = ssub.s32 1, %s4
  %s7 = scalar_select 0, %s6, %s4
  $region1: #{tpu_custom_call.1} parent=0
    #allocation2 [shape = 'u8[4096]{0}', space=vmem, size = 0x1000, scoped, tag = 'input window, operand 0, single buffered']
    #allocation3 [shape = 's32[1]{0}', space=sflag, size = 0x4, scoped, tag = 'scoped memory for tpu_custom_call.1']
    #allocation4 [shape = 's32[1]{0}', space=sflag, size = 0x4, scoped, tag = 'scoped memory for tpu_custom_call.1']
    #allocation5 [shape = 'u8[131072]{0}', space=vmem, size = 0x20000, scoped, tag = 'input window, operand 1, single buffered']
    #allocation6 [shape = 's32[1]{0}', space=sflag, size = 0x4, scoped, tag = 'scoped memory for tpu_custom_call.1']
    #allocation7 [shape = 'u8[2048]{0}', space=vmem, size = 0x800, scoped, tag = 'input window, operand 2, single buffered']
    #allocation8 [shape = 'u8[4096]{0}', space=vmem, size = 0x1000, scoped, tag = 'output window, operand 0, single buffered']
    %8 = vsyncpa [#allocation3], 0
    %9 = vsyncpa [#allocation6], 0
    %10 = vsyncpa [#allocation4], 0
    // Predicated region
    $region2: #{tpu_custom_call.1} parent=1 // pred_check
      _
    $region3: #{tpu_custom_call.1} parent=1 // pred_check_branch
      %12 = sbr.rel (0) target = $region5
    $region4: #{tpu_custom_call.1} parent=1 // pred_region
      %s14 = ssub.s32 128, 128
      %15 = vsyncadd [#allocation3], %s14
      %s17 = sshll.u32 [#allocation2], 4
      %s18 = int_to_ptr.vmem [resolvable:$true] %s17
      %20 = dma.hbm_to_vmem [thread:$0]  %s0, 128, %s18, [#allocation3]
    $region5: #{tpu_custom_call.1} parent=1 // pred_fallthru
      _
    // Predicated region
    $region6: #{tpu_custom_call.1} parent=1 // pred_check
      _
    $region7: #{tpu_custom_call.1} parent=1 // pred_check_branch
      %22 = sbr.rel (0) target = $region9
    $region8: #{tpu_custom_call.1} parent=1 // pred_region
      %s24 = ssub.s32 4096, 4096
      %25 = vsyncadd [#allocation6], %s24
      %s26 = sshll.u32 [#allocation5], 4
      %s27 = int_to_ptr.vmem [resolvable:$true] %s26
      %32 = dma.hbm_to_vmem [thread:$0]  %s1, 4096, %s27, [#allocation6], 64, 64, 4
    $region9: #{tpu_custom_call.1} parent=1 // pred_fallthru
      _
    // Predicated region
    $region10: #{tpu_custom_call.1} parent=1 // pred_check
      _
    $region11: #{tpu_custom_call.1} parent=1 // pred_check_branch
      %34 = sbr.rel (0) target = $region13
    $region12: #{tpu_custom_call.1} parent=1 // pred_region
      %s36 = ssub.s32 64, 64
      %37 = vsyncadd [#allocation6], %s36
      %s38 = sshll.u32 [#allocation7], 4
      %s39 = int_to_ptr.vmem [resolvable:$true] %s38
      %44 = dma.hbm_to_vmem [thread:$0]  %s2, 64, %s39, [#allocation6], 16, 16, 1
    $region13: #{tpu_custom_call.1} parent=1 // pred_fallthru
      _
    // Predicated region
    $region14: #{tpu_custom_call.1} parent=1 // pred_check
      _
    $region15: #{tpu_custom_call.1} parent=1 // pred_check_branch
      %46 = sbr.rel (0) target = $region17
    $region16: #{tpu_custom_call.1} parent=1 // pred_region
      %47 = dma.done [#allocation3], 128
    $region17: #{tpu_custom_call.1} parent=1 // pred_fallthru
      _
    // Predicated region
    $region18: #{tpu_custom_call.1} parent=1 // pred_check
      _
    $region19: #{tpu_custom_call.1} parent=1 // pred_check_branch
      %49 = sbr.rel (0) target = $region21
    $region20: #{tpu_custom_call.1} parent=1 // pred_region
      %50 = dma.done [#allocation6], 4096
    $region21: #{tpu_custom_call.1} parent=1 // pred_fallthru
      _
    // Predicated region
    $region22: #{tpu_custom_call.1} parent=1 // pred_check
      _
    $region23: #{tpu_custom_call.1} parent=1 // pred_check_branch
      %52 = sbr.rel (0) target = $region25
    $region24: #{tpu_custom_call.1} parent=1 // pred_region
      %53 = dma.done [#allocation6], 64
    $region25: #{tpu_custom_call.1} parent=1 // pred_fallthru
      _
    %v55 = vld [vmem:[#allocation7] sm:$0x1]
    %s56 = scalar_lea.vmem [#allocation7], 1
    %v57 = vld [vmem:[%s56] sm:$0x1]
    %s58 = scalar_lea.vmem [#allocation7], 2
    %v59 = vld [vmem:[%s58] sm:$0x1]
    %s60 = scalar_lea.vmem [#allocation7], 3
    %v61 = vld [vmem:[%s60] sm:$0x1]
    %v62 = vld [vmem:[#allocation2] sm:$0xff]
    %v63 = vpack.c.bf16 %v62, %v62
    %v64 = vld [vmem:[#allocation5] sm:$0xf]
    %v65 = vld [vmem:[#allocation5 + $0x4] sm:$0xf]
    %v66 = vld [vmem:[#allocation5 + $0x8] sm:$0xf]
    %v67 = vld [vmem:[#allocation5 + $0xc] sm:$0xf]
    %v68 = vld [vmem:[#allocation5 + $0x10] sm:$0xf]
    %v69 = vld [vmem:[#allocation5 + $0x14] sm:$0xf]
    %v70 = vld [vmem:[#allocation5 + $0x18] sm:$0xf]
    %v71 = vld [vmem:[#allocation5 + $0x1c] sm:$0xf]
    %v72 = vld [vmem:[#allocation5 + $0x20] sm:$0xf]
    %v73 = vld [vmem:[#allocation5 + $0x24] sm:$0xf]
    %v74 = vld [vmem:[#allocation5 + $0x28] sm:$0xf]
    %v75 = vld [vmem:[#allocation5 + $0x2c] sm:$0xf]
    %v76 = vld [vmem:[#allocation5 + $0x30] sm:$0xf]
    %v77 = vld [vmem:[#allocation5 + $0x34] sm:$0xf]
    %v78 = vld [vmem:[#allocation5 + $0x38] sm:$0xf]
    %v79 = vld [vmem:[#allocation5 + $0x3c] sm:$0xf]
    %v81 = vlaneseq
    %v82 = vshrl.u32 %v81, 7
    %v83 = vsub.s32 0, %v82
    %v84 = vrot.slane %v55, %v83
    %v102 = vunpack.c.l.b16 %v64
    %v103 = vunpack.c.l.b16 %v65
    %v104 = vunpack.c.l.b16 %v66
    %v105 = vunpack.c.l.b16 %v67
    %v106 = vunpack.c.l.b16 %v68
    %v107 = vunpack.c.l.b16 %v69
    %v108 = vunpack.c.l.b16 %v70
    %v109 = vunpack.c.l.b16 %v71
    %v110 = vunpack.c.l.b16 %v72
    %v111 = vunpack.c.l.b16 %v73
    %v112 = vunpack.c.l.b16 %v74
    %v113 = vunpack.c.l.b16 %v75
    %v114 = vunpack.c.l.b16 %v76
    %v115 = vunpack.c.l.b16 %v77
    %v116 = vunpack.c.l.b16 %v78
    %v117 = vunpack.c.l.b16 %v79
    %v118 = vpack.c.b16 %v103, %v102
    %v119 = vpack.c.b16 %v105, %v104
    %v120 = vpack.c.b16 %v107, %v106
    %v121 = vpack.c.b16 %v109, %v108
    %v122 = vpack.c.b16 %v111, %v110
    %v123 = vpack.c.b16 %v113, %v112
    %v124 = vpack.c.b16 %v115, %v114
    %v125 = vpack.c.b16 %v117, %v116
    %134 = vmatprep.subr.bf16.mxu0 0
    %135 = vmatpush1.bf16.msra.mxu0 %v125
    %136 = vmatprep.subr.bf16.mxu0 0
    %137 = vmatpush1.bf16.msra.mxu0 %v124
    %138 = vmatprep.subr.bf16.mxu0 0
    %139 = vmatpush1.bf16.msra.mxu0 %v123
    %140 = vmatprep.subr.bf16.mxu0 0
    %141 = vmatpush1.bf16.msra.mxu0 %v122
    %142 = vmatprep.subr.bf16.mxu0 0
    %143 = vmatpush1.bf16.msra.mxu0 %v121
    %144 = vmatprep.subr.bf16.mxu0 0
    %145 = vmatpush1.bf16.msra.mxu0 %v120
    %146 = vmatprep.subr.bf16.mxu0 0
    %147 = vmatpush1.bf16.msra.mxu0 %v119
    %148 = vmatprep.subr.bf16.mxu0 0
    %149 = vmatpush1.bf16.msra.mxu0 %v118
    %150 = vmatprep.subr.bf16.mxu0 0
    %151 = vmatpush2.bf16.msra.mxu0 0
    %152 = vmatprep.subr.bf16.mxu0 0
    %153 = vmatpush2.bf16.msra.mxu0 0
    %154 = vmatprep.subr.bf16.mxu0 0
    %155 = vmatpush2.bf16.msra.mxu0 0
    %156 = vmatprep.subr.bf16.mxu0 0
    %157 = vmatpush2.bf16.msra.mxu0 0
    %158 = vmatprep.subr.bf16.mxu0 0
    %159 = vmatpush2.bf16.msra.mxu0 0
    %160 = vmatprep.subr.bf16.mxu0 0
    %161 = vmatpush2.bf16.msra.mxu0 0
    %162 = vmatprep.subr.bf16.mxu0 0
    %163 = vmatpush2.bf16.msra.mxu0 0
    %164 = vmatprep.subr.bf16.mxu0 0
    %165 = vmatpush2.bf16.msra.mxu0 0
    %166 = vmatprep.mubr.bf16.mxu0 0
    %167 = vmatmul.mubr.bf16.gmra.mxu0 %v63
    %v168 = vpop.f32.mrf.mxu0
    %v169 = vadd.f32 %v84, %v168
    %v170 = vpop.f32.mrf.mxu0
    %v171 = vpop.f32.mrf.mxu0
    %v172 = vpop.f32.mrf.mxu0
    %173 = vdwg.mxu0
    %v174 = vtanh.pop %v169
    %v175 = vpack.c.bf16 %v174, %v174
    %s176 = scalar_lea.vmem [#allocation5], 64
    %v177 = vld [vmem:[%s176] sm:$0xf]
    %v178 = vld [vmem:[%s176 + $0x4] sm:$0xf]
    %v179 = vld [vmem:[%s176 + $0x8] sm:$0xf]
    %v180 = vld [vmem:[%s176 + $0xc] sm:$0xf]
    %v181 = vld [vmem:[%s176 + $0x10] sm:$0xf]
    %v182 = vld [vmem:[%s176 + $0x14] sm:$0xf]
    %v183 = vld [vmem:[%s176 + $0x18] sm:$0xf]
    %v184 = vld [vmem:[%s176 + $0x1c] sm:$0xf]
    %v185 = vld [vmem:[%s176 + $0x20] sm:$0xf]
    %v186 = vld [vmem:[%s176 + $0x24] sm:$0xf]
    %v187 = vld [vmem:[%s176 + $0x28] sm:$0xf]
    %v188 = vld [vmem:[%s176 + $0x2c] sm:$0xf]
    %v189 = vld [vmem:[%s176 + $0x30] sm:$0xf]
    %v190 = vld [vmem:[%s176 + $0x34] sm:$0xf]
    %v191 = vld [vmem:[%s176 + $0x38] sm:$0xf]
    %v192 = vld [vmem:[%s176 + $0x3c] sm:$0xf]
    %v194 = vlaneseq
    %v195 = vshrl.u32 %v194, 7
    %v196 = vsub.s32 0, %v195
    %v197 = vrot.slane %v57, %v196
    %v215 = vunpack.c.l.b16 %v177
    %v216 = vunpack.c.l.b16 %v178
    %v217 = vunpack.c.l.b16 %v179
    %v218 = vunpack.c.l.b16 %v180
    %v219 = vunpack.c.l.b16 %v181
    %v220 = vunpack.c.l.b16 %v182
    %v221 = vunpack.c.l.b16 %v183
    %v222 = vunpack.c.l.b16 %v184
    %v223 = vunpack.c.l.b16 %v185
    %v224 = vunpack.c.l.b16 %v186
    %v225 = vunpack.c.l.b16 %v187
    %v226 = vunpack.c.l.b16 %v188
    %v227 = vunpack.c.l.b16 %v189
    %v228 = vunpack.c.l.b16 %v190
    %v229 = vunpack.c.l.b16 %v191
    %v230 = vunpack.c.l.b16 %v192
    %v231 = vpack.c.b16 %v216, %v215
    %v232 = vpack.c.b16 %v218, %v217
    %v233 = vpack.c.b16 %v220, %v219
    %v234 = vpack.c.b16 %v222, %v221
    %v235 = vpack.c.b16 %v224, %v223
    %v236 = vpack.c.b16 %v226, %v225
    %v237 = vpack.c.b16 %v228, %v227
    %v238 = vpack.c.b16 %v230, %v229
    %247 = vmatprep.subr.bf16.mxu0 0
    %248 = vmatpush1.bf16.msra.mxu0 %v238
    %249 = vmatprep.subr.bf16.mxu0 0
    %250 = vmatpush1.bf16.msra.mxu0 %v237
    %251 = vmatprep.subr.bf16.mxu0 0
    %252 = vmatpush1.bf16.msra.mxu0 %v236
    %253 = vmatprep.subr.bf16.mxu0 0
    %254 = vmatpush1.bf16.msra.mxu0 %v235
    %255 = vmatprep.subr.bf16.mxu0 0
    %256 = vmatpush1.bf16.msra.mxu0 %v234
    %257 = vmatprep.subr.bf16.mxu0 0
    %258 = vmatpush1.bf16.msra.mxu0 %v233
    %259 = vmatprep.subr.bf16.mxu0 0
    %260 = vmatpush1.bf16.msra.mxu0 %v232
    %261 = vmatprep.subr.bf16.mxu0 0
    %262 = vmatpush1.bf16.msra.mxu0 %v231
    %263 = vmatprep.subr.bf16.mxu0 0
    %264 = vmatpush2.bf16.msra.mxu0 0
    %265 = vmatprep.subr.bf16.mxu0 0
    %266 = vmatpush2.bf16.msra.mxu0 0
    %267 = vmatprep.subr.bf16.mxu0 0
    %268 = vmatpush2.bf16.msra.mxu0 0
    %269 = vmatprep.subr.bf16.mxu0 0
    %270 = vmatpush2.bf16.msra.mxu0 0
    %271 = vmatprep.subr.bf16.mxu0 0
    %272 = vmatpush2.bf16.msra.mxu0 0
    %273 = vmatprep.subr.bf16.mxu0 0
    %274 = vmatpush2.bf16.msra.mxu0 0
    %275 = vmatprep.subr.bf16.mxu0 0
    %276 = vmatpush2.bf16.msra.mxu0 0
    %277 = vmatprep.subr.bf16.mxu0 0
    %278 = vmatpush2.bf16.msra.mxu0 0
    %279 = vmatprep.mubr.bf16.mxu0 0
    %280 = vmatmul.mubr.bf16.gmra.mxu0 %v175
    %v281 = vpop.f32.mrf.mxu0
    %v282 = vadd.f32 %v197, %v281
    %v283 = vpop.f32.mrf.mxu0
    %v284 = vpop.f32.mrf.mxu0
    %v285 = vpop.f32.mrf.mxu0
    %286 = vdwg.mxu0
    %v287 = vtanh.pop %v282
    %v288 = vpack.c.bf16 %v287, %v287
    %s289 = scalar_lea.vmem [#allocation5], 128
    %v290 = vld [vmem:[%s289] sm:$0xf]
    %v291 = vld [vmem:[%s289 + $0x4] sm:$0xf]
    %v292 = vld [vmem:[%s289 + $0x8] sm:$0xf]
    %v293 = vld [vmem:[%s289 + $0xc] sm:$0xf]
    %v294 = vld [vmem:[%s289 + $0x10] sm:$0xf]
    %v295 = vld [vmem:[%s289 + $0x14] sm:$0xf]
    %v296 = vld [vmem:[%s289 + $0x18] sm:$0xf]
    %v297 = vld [vmem:[%s289 + $0x1c] sm:$0xf]
    %v298 = vld [vmem:[%s289 + $0x20] sm:$0xf]
    %v299 = vld [vmem:[%s289 + $0x24] sm:$0xf]
    %v300 = vld [vmem:[%s289 + $0x28] sm:$0xf]
    %v301 = vld [vmem:[%s289 + $0x2c] sm:$0xf]
    %v302 = vld [vmem:[%s289 + $0x30] sm:$0xf]
    %v303 = vld [vmem:[%s289 + $0x34] sm:$0xf]
    %v304 = vld [vmem:[%s289 + $0x38] sm:$0xf]
    %v305 = vld [vmem:[%s289 + $0x3c] sm:$0xf]
    %v307 = vlaneseq
    %v308 = vshrl.u32 %v307, 7
    %v309 = vsub.s32 0, %v308
    %v310 = vrot.slane %v59, %v309
    %v328 = vunpack.c.l.b16 %v290
    %v329 = vunpack.c.l.b16 %v291
    %v330 = vunpack.c.l.b16 %v292
    %v331 = vunpack.c.l.b16 %v293
    %v332 = vunpack.c.l.b16 %v294
    %v333 = vunpack.c.l.b16 %v295
    %v334 = vunpack.c.l.b16 %v296
    %v335 = vunpack.c.l.b16 %v297
    %v336 = vunpack.c.l.b16 %v298
    %v337 = vunpack.c.l.b16 %v299
    %v338 = vunpack.c.l.b16 %v300
    %v339 = vunpack.c.l.b16 %v301
    %v340 = vunpack.c.l.b16 %v302
    %v341 = vunpack.c.l.b16 %v303
    %v342 = vunpack.c.l.b16 %v304
    %v343 = vunpack.c.l.b16 %v305
    %v344 = vpack.c.b16 %v329, %v328
    %v345 = vpack.c.b16 %v331, %v330
    %v346 = vpack.c.b16 %v333, %v332
    %v347 = vpack.c.b16 %v335, %v334
    %v348 = vpack.c.b16 %v337, %v336
    %v349 = vpack.c.b16 %v339, %v338
    %v350 = vpack.c.b16 %v341, %v340
    %v351 = vpack.c.b16 %v343, %v342
    %360 = vmatprep.subr.bf16.mxu0 0
    %361 = vmatpush1.bf16.msra.mxu0 %v351
    %362 = vmatprep.subr.bf16.mxu0 0
    %363 = vmatpush1.bf16.msra.mxu0 %v350
    %364 = vmatprep.subr.bf16.mxu0 0
    %365 = vmatpush1.bf16.msra.mxu0 %v349
    %366 = vmatprep.subr.bf16.mxu0 0
    %367 = vmatpush1.bf16.msra.mxu0 %v348
    %368 = vmatprep.subr.bf16.mxu0 0
    %369 = vmatpush1.bf16.msra.mxu0 %v347
    %370 = vmatprep.subr.bf16.mxu0 0
    %371 = vmatpush1.bf16.msra.mxu0 %v346
    %372 = vmatprep.subr.bf16.mxu0 0
    %373 = vmatpush1.bf16.msra.mxu0 %v345
    %374 = vmatprep.subr.bf16.mxu0 0
    %375 = vmatpush1.bf16.msra.mxu0 %v344
    %376 = vmatprep.subr.bf16.mxu0 0
    %377 = vmatpush2.bf16.msra.mxu0 0
    %378 = vmatprep.subr.bf16.mxu0 0
    %379 = vmatpush2.bf16.msra.mxu0 0
    %380 = vmatprep.subr.bf16.mxu0 0
    %381 = vmatpush2.bf16.msra.mxu0 0
    %382 = vmatprep.subr.bf16.mxu0 0
    %383 = vmatpush2.bf16.msra.mxu0 0
    %384 = vmatprep.subr.bf16.mxu0 0
    %385 = vmatpush2.bf16.msra.mxu0 0
    %386 = vmatprep.subr.bf16.mxu0 0
    %387 = vmatpush2.bf16.msra.mxu0 0
    %388 = vmatprep.subr.bf16.mxu0 0
    %389 = vmatpush2.bf16.msra.mxu0 0
    %390 = vmatprep.subr.bf16.mxu0 0
    %391 = vmatpush2.bf16.msra.mxu0 0
    %392 = vmatprep.mubr.bf16.mxu0 0
    %393 = vmatmul.mubr.bf16.gmra.mxu0 %v288
    %v394 = vpop.f32.mrf.mxu0
    %v395 = vadd.f32 %v310, %v394
    %v396 = vpop.f32.mrf.mxu0
    %v397 = vpop.f32.mrf.mxu0
    %v398 = vpop.f32.mrf.mxu0
    %399 = vdwg.mxu0
    %v400 = vtanh.pop %v395
    %v401 = vpack.c.bf16 %v400, %v400
    %s402 = scalar_lea.vmem [#allocation5], 192
    %v403 = vld [vmem:[%s402] sm:$0xf]
    %v404 = vld [vmem:[%s402 + $0x4] sm:$0xf]
    %v405 = vld [vmem:[%s402 + $0x8] sm:$0xf]
    %v406 = vld [vmem:[%s402 + $0xc] sm:$0xf]
    %v407 = vld [vmem:[%s402 + $0x10] sm:$0xf]
    %v408 = vld [vmem:[%s402 + $0x14] sm:$0xf]
    %v409 = vld [vmem:[%s402 + $0x18] sm:$0xf]
    %v410 = vld [vmem:[%s402 + $0x1c] sm:$0xf]
    %v411 = vld [vmem:[%s402 + $0x20] sm:$0xf]
    %v412 = vld [vmem:[%s402 + $0x24] sm:$0xf]
    %v413 = vld [vmem:[%s402 + $0x28] sm:$0xf]
    %v414 = vld [vmem:[%s402 + $0x2c] sm:$0xf]
    %v415 = vld [vmem:[%s402 + $0x30] sm:$0xf]
    %v416 = vld [vmem:[%s402 + $0x34] sm:$0xf]
    %v417 = vld [vmem:[%s402 + $0x38] sm:$0xf]
    %v418 = vld [vmem:[%s402 + $0x3c] sm:$0xf]
    %v420 = vlaneseq
    %v421 = vshrl.u32 %v420, 7
    %v422 = vsub.s32 0, %v421
    %v423 = vrot.slane %v61, %v422
    %v441 = vunpack.c.l.b16 %v403
    %v442 = vunpack.c.l.b16 %v404
    %v443 = vunpack.c.l.b16 %v405
    %v444 = vunpack.c.l.b16 %v406
    %v445 = vunpack.c.l.b16 %v407
    %v446 = vunpack.c.l.b16 %v408
    %v447 = vunpack.c.l.b16 %v409
    %v448 = vunpack.c.l.b16 %v410
    %v449 = vunpack.c.l.b16 %v411
    %v450 = vunpack.c.l.b16 %v412
    %v451 = vunpack.c.l.b16 %v413
    %v452 = vunpack.c.l.b16 %v414
    %v453 = vunpack.c.l.b16 %v415
    %v454 = vunpack.c.l.b16 %v416
    %v455 = vunpack.c.l.b16 %v417
    %v456 = vunpack.c.l.b16 %v418
    %v457 = vpack.c.b16 %v442, %v441
    %v458 = vpack.c.b16 %v444, %v443
    %v459 = vpack.c.b16 %v446, %v445
    %v460 = vpack.c.b16 %v448, %v447
    %v461 = vpack.c.b16 %v450, %v449
    %v462 = vpack.c.b16 %v452, %v451
    %v463 = vpack.c.b16 %v454, %v453
    %v464 = vpack.c.b16 %v456, %v455
    %473 = vmatprep.subr.bf16.mxu0 0
    %474 = vmatpush1.bf16.msra.mxu0 %v464
    %475 = vmatprep.subr.bf16.mxu0 0
    %476 = vmatpush1.bf16.msra.mxu0 %v463
    %477 = vmatprep.subr.bf16.mxu0 0
    %478 = vmatpush1.bf16.msra.mxu0 %v462
    %479 = vmatprep.subr.bf16.mxu0 0
    %480 = vmatpush1.bf16.msra.mxu0 %v461
    %481 = vmatprep.subr.bf16.mxu0 0
    %482 = vmatpush1.bf16.msra.mxu0 %v460
    %483 = vmatprep.subr.bf16.mxu0 0
    %484 = vmatpush1.bf16.msra.mxu0 %v459
    %485 = vmatprep.subr.bf16.mxu0 0
    %486 = vmatpush1.bf16.msra.mxu0 %v458
    %487 = vmatprep.subr.bf16.mxu0 0
    %488 = vmatpush1.bf16.msra.mxu0 %v457
    %489 = vmatprep.subr.bf16.mxu0 0
    %490 = vmatpush2.bf16.msra.mxu0 0
    %491 = vmatprep.subr.bf16.mxu0 0
    %492 = vmatpush2.bf16.msra.mxu0 0
    %493 = vmatprep.subr.bf16.mxu0 0
    %494 = vmatpush2.bf16.msra.mxu0 0
    %495 = vmatprep.subr.bf16.mxu0 0
    %496 = vmatpush2.bf16.msra.mxu0 0
    %497 = vmatprep.subr.bf16.mxu0 0
    %498 = vmatpush2.bf16.msra.mxu0 0
    %499 = vmatprep.subr.bf16.mxu0 0
    %500 = vmatpush2.bf16.msra.mxu0 0
    %501 = vmatprep.subr.bf16.mxu0 0
    %502 = vmatpush2.bf16.msra.mxu0 0
    %503 = vmatprep.subr.bf16.mxu0 0
    %504 = vmatpush2.bf16.msra.mxu0 0
    %505 = vmatprep.mubr.bf16.mxu0 0
    %506 = vmatmul.mubr.bf16.gmra.mxu0 %v401
    %v507 = vpop.f32.mrf.mxu0
    %v508 = vadd.f32 %v423, %v507
    %v509 = vpop.f32.mrf.mxu0
    %v510 = vpop.f32.mrf.mxu0
    %v511 = vpop.f32.mrf.mxu0
    %512 = vdwg.mxu0
    %513 = vst [vmem:[#allocation8] sm:$0xff] %v508
    // Predicated region
    $region26: #{tpu_custom_call.1} parent=1 // pred_check
      _
    $region27: #{tpu_custom_call.1} parent=1 // pred_check_branch
      %515 = sbr.rel (0) target = $region29
    $region28: #{tpu_custom_call.1} parent=1 // pred_region
      %s517 = ssub.s32 128, 128
      %518 = vsyncadd [#allocation4], %s517
      %s520 = sshll.u32 [#allocation8], 4
      %s521 = int_to_ptr.vmem [resolvable:$true] %s520
      %523 = dma.vmem_to_hbm [thread:$0]  %s521, 128, %s3, [#allocation4]
    $region29: #{tpu_custom_call.1} parent=1 // pred_fallthru
      _
    // Predicated region
    $region30: #{tpu_custom_call.1} parent=1 // pred_check
      _
    $region31: #{tpu_custom_call.1} parent=1 // pred_check_branch
      %525 = sbr.rel (0) target = $region33
    $region32: #{tpu_custom_call.1} parent=1 // pred_region
      %526 = dma.done [#allocation4], 128
    $region33: #{tpu_custom_call.1} parent=1 // pred_fallthru
      _
    %527 = vsyncpa [#allocation3], 1
    %528 = vsyncpa [#allocation6], 1
    %529 = vsyncpa [#allocation4], 1

</llo_original>
